<compile_context>
chip_gen: v6e
topology: v6e:2x2x1
jax: 0.10.0
libtpu: 0.0.40
codegen_flags: <defaults>
</compile_context>

<pallas_src>
import jax
import jax.numpy as jnp
from jax.experimental import pallas as pl
from jax.experimental.pallas import tpu as pltpu


def mlp_prelu_kernel(x_ref, w1_ref, b1_ref, alpha_ref, w2_ref, b2_ref, o_ref):
    # x: (TILE_B, D), w1: (D, 36), b1: (1, 36), alpha: (1, 1) SMEM scalar,
    # w2: (1, 36) row, b2: (1, 1), o: (TILE_B, 1)
    x = x_ref[...]
    h = jnp.dot(x, w1_ref[...], preferred_element_type=jnp.float32) + b1_ref[...]
    alpha = alpha_ref[0, 0]
    h = jnp.where(h >= 0.0, h, alpha * h)                  # PReLU (1 shared param)
    # (TILE_B, 36) @ (36, 1) is a waste of the MXU: do it as a lane-wise multiply
    # (VPU) + cross-lane reduction (XLU) in otherwise idle bundle slots.
    out = jnp.sum(h * w2_ref[...], axis=-1, keepdims=True) + b2_ref[...]
    o_ref[...] = out.astype(o_ref.dtype)


def attention_model_forward(x, w1, b1, alpha, w2, b2, *, tile_b=8192):
    """x: (B, D) f32. w1: (D, 36), b1: (36,), alpha: scalar, w2: (36, 1), b2: (1,).
    Returns (B, 1) f32."""
    B, D = x.shape
    H = w1.shape[1]            # 36
    O = w2.shape[1]            # 1

    # --- tile sizing: big tiles amortize per-step overhead; sized well under the
    # v7x 32 MiB scoped-VMEM default (tile_b=8192, D=32 f32 -> 1 MiB x 2 buffers).
    tile_b = min(tile_b, max(B, 8))
    tile_b = ((tile_b + 7) // 8) * 8          # sublane-aligned
    B_pad = pl.cdiv(B, tile_b) * tile_b
    if B_pad != B:
        x = jnp.pad(x, ((0, B_pad - B), (0, 0)))
    grid = (B_pad // tile_b,)

    b1_2d = b1.reshape(1, H)
    b2_2d = b2.reshape(1, O)
    w2_row = w2.reshape(1, H)                 # lane-resident row for VPU reduce
    alpha_2d = alpha.reshape(1, 1)

    out = pl.pallas_call(
        mlp_prelu_kernel,
        out_shape=jax.ShapeDtypeStruct((B_pad, O), jnp.float32),
        grid=grid,
        in_specs=[
            # x: tiled along batch, auto-pipelined HBM<->VMEM.
            pl.BlockSpec((tile_b, D), lambda i: (i, 0)),
            # weights/biases: whole arrays, block index constant -> stay resident.
            pl.BlockSpec((D, H), lambda i: (0, 0)),
            pl.BlockSpec((1, H), lambda i: (0, 0)),
            pl.BlockSpec((1, 1), lambda i: (0, 0),
                         memory_space=pltpu.MemorySpace.SMEM),
            pl.BlockSpec((1, H), lambda i: (0, 0)),
            pl.BlockSpec((1, O), lambda i: (0, 0)),
        ],
        out_specs=pl.BlockSpec((tile_b, O), lambda i: (i, 0)),
        compiler_params=pltpu.CompilerParams(
            dimension_semantics=("parallel",),   # lets v7x's 2 TCs split the batch
        ),
    )(x, w1, b1_2d, alpha_2d, w2_row, b2_2d)

    return out[:B]


def reference_forward(x, w1, b1, alpha, w2, b2):
    h = x @ w1 + b1
    h = jnp.where(h >= 0.0, h, alpha * h)
    return h @ w2 + b2


if __name__ == "__main__":
    key = jax.random.PRNGKey(0)
    D, H, O = 32, 36, 1

    kx, kw1, kb1, kw2, kb2, kx2 = jax.random.split(key, 6)

    # Deterministic synthetic parameters (shapes match nn.Linear(D,36), PReLU(1),
    # nn.Linear(36,1)); stored as (in, out) for the kernel.
    w1 = jax.random.normal(kw1, (D, H), dtype=jnp.float32) * (1.0 / jnp.sqrt(D))
    b1 = jax.random.normal(kb1, (H,), dtype=jnp.float32) * 0.1
    alpha = jnp.array(0.1, dtype=jnp.float32)   # PReLU init=0.1, num_parameters=1
    w2 = jax.random.normal(kw2, (H, O), dtype=jnp.float32) * (1.0 / jnp.sqrt(H))
    b2 = jax.random.normal(kb2, (O,), dtype=jnp.float32) * 0.1

    # Small primary test (single tile).
    B = 8
    x = jax.random.normal(kx, (B, D), dtype=jnp.float32)
    out = attention_model_forward(x, w1, b1, alpha, w2, b2)
    out = jax.block_until_ready(out)
    ref = reference_forward(x, w1, b1, alpha, w2, b2)
    assert out.shape == (B, O)
    assert jnp.allclose(out, ref, atol=1e-5, rtol=1e-5), "mismatch vs reference (B=8)"

    # Secondary test exercising the batch grid + non-divisible-B tail padding.
    B2 = 200
    x2 = jax.random.normal(kx2, (B2, D), dtype=jnp.float32)
    out2 = attention_model_forward(x2, w1, b1, alpha, w2, b2, tile_b=64)
    out2 = jax.block_until_ready(out2)
    ref2 = reference_forward(x2, w1, b1, alpha, w2, b2)
    assert out2.shape == (B2, O)
    assert jnp.allclose(out2, ref2, atol=1e-5, rtol=1e-5), "mismatch vs reference (B=200)"

    print("KERNEL_OK")
</pallas_src>

<mosaic_0001>
module attributes {stable_mosaic.version = 11 : i64} {
  func.func @mlp_prelu_kernel(%arg0: i32, %arg1: memref<8x32xf32, #tpu.memory_space<vmem>>, %arg2: memref<32x36xf32, #tpu.memory_space<vmem>>, %arg3: memref<1x36xf32, #tpu.memory_space<vmem>>, %arg4: memref<1x1xf32, #tpu.memory_space<smem>>, %arg5: memref<1x36xf32, #tpu.memory_space<vmem>>, %arg6: memref<1x1xf32, #tpu.memory_space<vmem>>, %arg7: memref<8x1xf32, #tpu.memory_space<vmem>>) attributes {dimension_semantics = [#tpu.dimension_semantics<parallel>], iteration_bounds = array<i64: 1>, scalar_prefetch = 0 : i64, scratch_operands = 0 : i64, tpu.core_type = #tpu.core_type<tc>, window_params = [{transform_indices = @transform_0, window_bounds = array<i64: 8, 32>}, {pipeline_mode = #tpu.pipeline_mode<synchronous>, transform_indices = @transform_1, window_bounds = array<i64: 32, 36>}, {pipeline_mode = #tpu.pipeline_mode<synchronous>, transform_indices = @transform_2, window_bounds = array<i64: 1, 36>}, {transform_indices = @transform_3, window_bounds = array<i64: 1, 1>}, {pipeline_mode = #tpu.pipeline_mode<synchronous>, transform_indices = @transform_4, window_bounds = array<i64: 1, 36>}, {pipeline_mode = #tpu.pipeline_mode<synchronous>, transform_indices = @transform_5, window_bounds = array<i64: 1, 1>}, {transform_indices = @transform_6, window_bounds = array<i64: 8, 1>}]} {
    %c0 = arith.constant 0 : index
    %c0_0 = arith.constant 0 : index
    %0 = vector.load %arg1[%c0, %c0_0] : memref<8x32xf32, #tpu.memory_space<vmem>>, vector<8x32xf32>
    %c0_1 = arith.constant 0 : index
    %c0_2 = arith.constant 0 : index
    %1 = vector.load %arg2[%c0_1, %c0_2] : memref<32x36xf32, #tpu.memory_space<vmem>>, vector<32x36xf32>
    %cst = arith.constant dense<0.000000e+00> : vector<8x36xf32>
    %2 = tpu.matmul %0, %1, %cst {dimension_numbers = #tpu.dot_dimension_numbers<[1], [0], [0], [1], [0, 0, 1, 1], [], []>} : vector<8x32xf32>, vector<32x36xf32>, vector<8x36xf32> -> vector<8x36xf32>
    %c0_3 = arith.constant 0 : index
    %c0_4 = arith.constant 0 : index
    %3 = vector.load %arg3[%c0_3, %c0_4] : memref<1x36xf32, #tpu.memory_space<vmem>>, vector<1x36xf32>
    %4 = vector.broadcast %3 : vector<1x36xf32> to vector<8x36xf32>
    %5 = arith.addf %2, %4 : vector<8x36xf32>
    %c0_5 = arith.constant 0 : index
    %c0_6 = arith.constant 0 : index
    %6 = memref.load %arg4[%c0_5, %c0_6] : memref<1x1xf32, #tpu.memory_space<smem>>
    %cst_7 = arith.constant 0.000000e+00 : f32
    %7 = vector.broadcast %cst_7 : f32 to vector<8x36xf32>
    %8 = arith.cmpf oge, %5, %7 : vector<8x36xf32>
    %9 = vector.broadcast %6 : f32 to vector<8x36xf32>
    %10 = arith.mulf %9, %5 : vector<8x36xf32>
    %11 = arith.select %8, %5, %10 : vector<8x36xi1>, vector<8x36xf32>
    %c0_8 = arith.constant 0 : index
    %c0_9 = arith.constant 0 : index
    %12 = vector.load %arg5[%c0_8, %c0_9] : memref<1x36xf32, #tpu.memory_space<vmem>>, vector<1x36xf32>
    %13 = vector.broadcast %12 : vector<1x36xf32> to vector<8x36xf32>
    %14 = arith.mulf %11, %13 : vector<8x36xf32>
    %cst_10 = arith.constant dense<0.000000e+00> : vector<8xf32>
    %15 = vector.multi_reduction <add>, %14, %cst_10 [1] : vector<8x36xf32> to vector<8xf32>
    %16 = vector.shape_cast %15 : vector<8xf32> to vector<8x1xf32>
    %c0_11 = arith.constant 0 : index
    %c0_12 = arith.constant 0 : index
    %17 = vector.load %arg6[%c0_11, %c0_12] : memref<1x1xf32, #tpu.memory_space<vmem>>, vector<1x1xf32>
    %18 = vector.broadcast %17 : vector<1x1xf32> to vector<8x1xf32>
    %19 = arith.addf %16, %18 : vector<8x1xf32>
    %c0_13 = arith.constant 0 : index
    %c0_14 = arith.constant 0 : index
    %20 = vector.load %arg7[%c0_13, %c0_14] : memref<8x1xf32, #tpu.memory_space<vmem>>, vector<8x1xf32>
    tpu.vector_store %arg7[%c0_13, %c0_14], %19 {strides = array<i32>} : memref<8x1xf32, #tpu.memory_space<vmem>>, vector<8x1xf32>,
    return
  }
  func.func @transform_0(%arg0: i32) -> (i32, i32) {
    %c0_i32 = arith.constant 0 : i32
    %c0_i32_0 = arith.constant 0 : i32
    return %arg0, %c0_i32 : i32, i32
  }
  func.func @transform_1(%arg0: i32) -> (i32, i32) {
    %c0_i32 = arith.constant 0 : i32
    %c0_i32_0 = arith.constant 0 : i32
    %c0_i32_1 = arith.constant 0 : i32
    return %c0_i32, %c0_i32_0 : i32, i32
  }
  func.func @transform_2(%arg0: i32) -> (i32, i32) {
    %c0_i32 = arith.constant 0 : i32
    %c0_i32_0 = arith.constant 0 : i32
    %c0_i32_1 = arith.constant 0 : i32
    return %c0_i32, %c0_i32_0 : i32, i32
  }
  func.func @transform_3(%arg0: i32) -> (i32, i32) {
    %c0_i32 = arith.constant 0 : i32
    %c0_i32_0 = arith.constant 0 : i32
    %c0_i32_1 = arith.constant 0 : i32
    return %c0_i32, %c0_i32_0 : i32, i32
  }
  func.func @transform_4(%arg0: i32) -> (i32, i32) {
    %c0_i32 = arith.constant 0 : i32
    %c0_i32_0 = arith.constant 0 : i32
    %c0_i32_1 = arith.constant 0 : i32
    return %c0_i32, %c0_i32_0 : i32, i32
  }
  func.func @transform_5(%arg0: i32) -> (i32, i32) {
    %c0_i32 = arith.constant 0 : i32
    %c0_i32_0 = arith.constant 0 : i32
    %c0_i32_1 = arith.constant 0 : i32
    return %c0_i32, %c0_i32_0 : i32, i32
  }
  func.func @transform_6(%arg0: i32) -> (i32, i32) {
    %c0_i32 = arith.constant 0 : i32
    %c0_i32_0 = arith.constant 0 : i32
    return %arg0, %c0_i32 : i32, i32
  }
}

</mosaic_0001>

<llo_original>
// kernel: tpu_custom_call.1
$region0: #{tpu_custom_call.1}
  #allocation0 [shape = 'u32[]', space=smem, size = 0x4, offset = 0x4, fixed_abs, tag = 'smem constant byte address 0x4 - core index']
  #allocation1 [shape = 'u32[144,128]{1,0:T(1,128)}', space=vmem, size = 0x12000, scoped, tag = 'internal scratch']
  #allocation2 [shape = 'f32[1,1]{1,0:T(1,128)S(6)}', space=smem, size = 0x200, scoped, tag = 'scoped memory for tpu_custom_call.1']
  #allocation3 [shape = 'f32[1,1]{1,0:T(1,128)S(1)}', space=vmem, size = 0x200, scoped, tag = 'scoped memory for tpu_custom_call.1']
  %s0 = inlined_call_operand.hbm [shape: f32[8,32], index: 0, kind: input, shape index: {}]
  %s1 = inlined_call_operand.hbm [shape: f32[32,36], index: 1, kind: input, shape index: {}]
  %s2 = inlined_call_operand.vmem [shape: f32[1,36], index: 2, kind: input, shape index: {}]
  %s3 = inlined_call_operand.<no memory space> [shape: f32[1,1], index: 3, kind: input, shape index: {}]
  %s4 = inlined_call_operand.vmem [shape: f32[1,36], index: 4, kind: input, shape index: {}]
  %s5 = inlined_call_operand.<no memory space> [shape: f32[1,1], index: 5, kind: input, shape index: {}]
  %s6 = inlined_call_operand.vmem [shape: f32[8,1], index: 6, kind: output, shape index: {}]
  %s7 = sld [smem:[#allocation0]]
  $region42: #{tpu_custom_call.1} parent=0
    _
  %s9 = ssub.s32 1, %s7
  %s10 = scalar_select 0, %s9, %s7
  %11 = sst [smem:[#allocation2]] %s3
  %v12 = vstv %s5
  %13 = vst [vmem:[#allocation3] sm:$0x1] %v12
  $region1: #{tpu_custom_call.1} parent=0
    #allocation4 [shape = 'u8[4096]{0}', space=vmem, size = 0x1000, scoped, tag = 'input window, operand 0, single buffered']
    #allocation5 [shape = 's32[1]{0}', space=sflag, size = 0x4, scoped, tag = 'scoped memory for tpu_custom_call.1']
    #allocation6 [shape = 'u8[16384]{0}', space=vmem, size = 0x4000, scoped, tag = 'input window, operand 1, single buffered']
    #allocation7 [shape = 's32[1]{0}', space=sflag, size = 0x4, scoped, tag = 'scoped memory for tpu_custom_call.1']
    %14 = vsyncpa [#allocation5], 0
    %15 = vsyncpa [#allocation7], 0
    // Predicated region
    $region2: #{tpu_custom_call.1} parent=1 // pred_check
      _
    $region3: #{tpu_custom_call.1} parent=1 // pred_check_branch
      %17 = sbr.rel (0) target = $region5
    $region4: #{tpu_custom_call.1} parent=1 // pred_region
      %s19 = ssub.s32 128, 128
      %20 = vsyncadd [#allocation5], %s19
      %s22 = sshll.u32 [#allocation4], 4
      %s23 = int_to_ptr.vmem [resolvable:$true] %s22
      %25 = dma.hbm_to_vmem [thread:$0]  %s0, 128, %s23, [#allocation5]
    $region5: #{tpu_custom_call.1} parent=1 // pred_fallthru
      _
    // Predicated region
    $region6: #{tpu_custom_call.1} parent=1 // pred_check
      _
    $region7: #{tpu_custom_call.1} parent=1 // pred_check_branch
      %27 = sbr.rel (0) target = $region9
    $region8: #{tpu_custom_call.1} parent=1 // pred_region
      %s29 = ssub.s32 512, 512
      %30 = vsyncadd [#allocation7], %s29
      %s31 = sshll.u32 [#allocation6], 4
      %s32 = int_to_ptr.vmem [resolvable:$true] %s31
      %37 = dma.hbm_to_vmem [thread:$0]  %s1, 512, %s32, [#allocation7], 128, 128, 8
    $region9: #{tpu_custom_call.1} parent=1 // pred_fallthru
      _
    // Predicated region
    $region10: #{tpu_custom_call.1} parent=1 // pred_check
      _
    $region11: #{tpu_custom_call.1} parent=1 // pred_check_branch
      %39 = sbr.rel (0) target = $region13
    $region12: #{tpu_custom_call.1} parent=1 // pred_region
      _
    $region13: #{tpu_custom_call.1} parent=1 // pred_fallthru
      _
    // Predicated region
    $region14: #{tpu_custom_call.1} parent=1 // pred_check
      _
    $region15: #{tpu_custom_call.1} parent=1 // pred_check_branch
      %41 = sbr.rel (0) target = $region17
    $region16: #{tpu_custom_call.1} parent=1 // pred_region
      _
    $region17: #{tpu_custom_call.1} parent=1 // pred_fallthru
      _
    // Predicated region
    $region18: #{tpu_custom_call.1} parent=1 // pred_check
      _
    $region19: #{tpu_custom_call.1} parent=1 // pred_check_branch
      %43 = sbr.rel (0) target = $region21
    $region20: #{tpu_custom_call.1} parent=1 // pred_region
      _
    $region21: #{tpu_custom_call.1} parent=1 // pred_fallthru
      _
    // Predicated region
    $region22: #{tpu_custom_call.1} parent=1 // pred_check
      _
    $region23: #{tpu_custom_call.1} parent=1 // pred_check_branch
      %45 = sbr.rel (0) target = $region25
    $region24: #{tpu_custom_call.1} parent=1 // pred_region
      _
    $region25: #{tpu_custom_call.1} parent=1 // pred_fallthru
      _
    // Predicated region
    $region26: #{tpu_custom_call.1} parent=1 // pred_check
      _
    $region27: #{tpu_custom_call.1} parent=1 // pred_check_branch
      %47 = sbr.rel (0) target = $region29
    $region28: #{tpu_custom_call.1} parent=1 // pred_region
      %48 = dma.done [#allocation5], 128
    $region29: #{tpu_custom_call.1} parent=1 // pred_fallthru
      _
    // Predicated region
    $region30: #{tpu_custom_call.1} parent=1 // pred_check
      _
    $region31: #{tpu_custom_call.1} parent=1 // pred_check_branch
      %50 = sbr.rel (0) target = $region33
    $region32: #{tpu_custom_call.1} parent=1 // pred_region
      %51 = dma.done [#allocation7], 512
    $region33: #{tpu_custom_call.1} parent=1 // pred_fallthru
      _
    %v52 = vld [vmem:[#allocation4] sm:$0xff]
    %v53 = vld [vmem:[#allocation6] sm:$0xff]
    %v54 = vld [vmem:[#allocation6 + $0x8] sm:$0xff]
    %v55 = vld [vmem:[#allocation6 + $0x10] sm:$0xff]
    %v56 = vld [vmem:[#allocation6 + $0x18] sm:$0xff]
    %v57 = vld [vmem:[%s2] sm:$0x1]
    %v59 = vlaneseq
    %v60 = vshrl.u32 %v59, 7
    %v61 = vsub.s32 0, %v60
    %v62 = vrot.slane %v57, %v61
    %vm64 = vcmask 261120
    %v66 = vsel %vm64, %v52, 0
    %68 = vmatprep.subr.mxu0 0.0
    %69 = vmatpush1.msra.mxu0 0.0
    %70 = vmatprep.subr.mxu0 0.0
    %71 = vmatpush1.msra.mxu0 0.0
    %72 = vmatprep.subr.mxu0 0.0
    %73 = vmatpush1.msra.mxu0 0.0
    %74 = vmatprep.subr.mxu0 0.0
    %75 = vmatpush1.msra.mxu0 0.0
    %76 = vmatprep.subr.mxu0 0.0
    %77 = vmatpush1.msra.mxu0 0.0
    %78 = vmatprep.subr.mxu0 0.0
    %79 = vmatpush1.msra.mxu0 0.0
    %80 = vmatprep.subr.mxu0 0.0
    %81 = vmatpush1.msra.mxu0 0.0
    %82 = vmatprep.subr.mxu0 0.0
    %83 = vmatpush1.msra.mxu0 0.0
    %84 = vmatprep.subr.mxu0 0.0
    %85 = vmatpush1.msra.mxu0 0.0
    %86 = vmatprep.subr.mxu0 0.0
    %87 = vmatpush1.msra.mxu0 0.0
    %88 = vmatprep.subr.mxu0 0.0
    %89 = vmatpush1.msra.mxu0 0.0
    %90 = vmatprep.subr.mxu0 0.0
    %91 = vmatpush1.msra.mxu0 0.0
    %92 = vmatprep.subr.mxu0 0.0
    %93 = vmatpush1.msra.mxu0 %v56
    %94 = vmatprep.subr.mxu0 0.0
    %95 = vmatpush1.msra.mxu0 %v55
    %96 = vmatprep.subr.mxu0 0.0
    %97 = vmatpush1.msra.mxu0 %v54
    %98 = vmatprep.subr.mxu0 0.0
    %99 = vmatpush1.msra.mxu0 %v53
    %100 = vmatprep.subr.mxu0 0.0
    %101 = vmatpush2.msra.mxu0 0.0
    %102 = vmatprep.subr.mxu0 0.0
    %103 = vmatpush2.msra.mxu0 0.0
    %104 = vmatprep.subr.mxu0 0.0
    %105 = vmatpush2.msra.mxu0 0.0
    %106 = vmatprep.subr.mxu0 0.0
    %107 = vmatpush2.msra.mxu0 0.0
    %108 = vmatprep.subr.mxu0 0.0
    %109 = vmatpush2.msra.mxu0 0.0
    %110 = vmatprep.subr.mxu0 0.0
    %111 = vmatpush2.msra.mxu0 0.0
    %112 = vmatprep.subr.mxu0 0.0
    %113 = vmatpush2.msra.mxu0 0.0
    %114 = vmatprep.subr.mxu0 0.0
    %115 = vmatpush2.msra.mxu0 0.0
    %116 = vmatprep.subr.mxu0 0.0
    %117 = vmatpush2.msra.mxu0 0.0
    %118 = vmatprep.subr.mxu0 0.0
    %119 = vmatpush2.msra.mxu0 0.0
    %120 = vmatprep.subr.mxu0 0.0
    %121 = vmatpush2.msra.mxu0 0.0
    %122 = vmatprep.subr.mxu0 0.0
    %123 = vmatpush2.msra.mxu0 0.0
    %124 = vmatprep.subr.mxu0 0.0
    %125 = vmatpush2.msra.mxu0 0.0
    %126 = vmatprep.subr.mxu0 0.0
    %127 = vmatpush2.msra.mxu0 0.0
    %128 = vmatprep.subr.mxu0 0.0
    %129 = vmatpush2.msra.mxu0 0.0
    %130 = vmatprep.subr.mxu0 0.0
    %131 = vmatpush2.msra.mxu0 0.0
    %132 = vmatprep.mubr.f32.mxu0 0.0
    %133 = vmatmul.mubr.f32.gmra.mxu0 %v66
    %v134 = vpop.f32.mrf.mxu0
    %v135 = vadd.f32 %v62, %v134
    %v136 = vpop.f32.mrf.mxu0
    %137 = vdwg.mxu0
    %s138 = sld [smem:[#allocation2]]
    %vm139 = vcmp.ge.f32.partialorder %v135, 0.0
    %v140 = vstv %s138
    %v141 = vmul.f32 %v140, %v135
    %v142 = vsel %vm139, %v135, %v141
    %v143 = vld [vmem:[%s4] sm:$0x1]
    %v145 = vlaneseq
    %v146 = vshrl.u32 %v145, 7
    %v147 = vsub.s32 0, %v146
    %v148 = vrot.slane %v143, %v147
    %v150 = vmul.f32 %v142, %v148
    %vm151 = vcmask 293888
    %v152 = vsel %vm151, %v150, 0.0
    %153 = vadd.xlane.f32.xlu0 %v152
    %v154 = vpop.xlane.xlu0 %153
    %v155 = vld [vmem:[#allocation3] sm:$0x1]
    %v157 = vlaneseq
    %v158 = vshrl.u32 %v157, 7
    %v159 = vsub.s32 0, %v158
    %v160 = vrot.slane %v155, %v159
    %v162 = vadd.f32 %v154, %v160
    %vm163 = vcmask 7168
    %164 = vst.msk [vmem:[%s6] sm:$0xff] %vm163, %v162
    // Predicated region
    $region34: #{tpu_custom_call.1} parent=1 // pred_check
      _
    $region35: #{tpu_custom_call.1} parent=1 // pred_check_branch
      %166 = sbr.rel (0) target = $region37
    $region36: #{tpu_custom_call.1} parent=1 // pred_region
      _
    $region37: #{tpu_custom_call.1} parent=1 // pred_fallthru
      _
    // Predicated region
    $region38: #{tpu_custom_call.1} parent=1 // pred_check
      _
    $region39: #{tpu_custom_call.1} parent=1 // pred_check_branch
      %168 = sbr.rel (0) target = $region41
    $region40: #{tpu_custom_call.1} parent=1 // pred_region
      _
    $region41: #{tpu_custom_call.1} parent=1 // pred_fallthru
      _
    %169 = vsyncpa [#allocation5], 1
    %170 = vsyncpa [#allocation7], 1

</llo_original>
